<compile_context>
chip_gen: v5e
topology: v5e:2x2
jax: 0.10.0
libtpu: 0.0.40
codegen_flags: <defaults>
</compile_context>

<pallas_src>
import functools
import math

import jax
import jax.numpy as jnp
from jax import lax
from jax.experimental import pallas as pl
from jax.experimental.pallas import tpu as pltpu


def _round_up(x: int, m: int) -> int:
    return ((x + m - 1) // m) * m


def _vmem_ceiling_bytes() -> int:
    """Generation-aware VMEM budget: capacity minus ~16 MiB headroom."""
    cap = None
    try:
        cap = getattr(pltpu.get_tpu_info(), "vmem_capacity_bytes", None)
    except Exception:
        cap = None
    if not cap:
        cap = 64 * 1024 * 1024  # conservative default (v7x per-TensorCore)
    return max(int(cap) - 16 * 1024 * 1024, 32 * 1024 * 1024)


def _single_buffered_spec(block_shape, index_map):
    """Constant-index operands only need one VMEM buffer (saves resident VMEM)."""
    try:
        return pl.BlockSpec(block_shape, index_map, pipeline_mode=pl.Buffered(1))
    except TypeError:  # older jax without pipeline_mode kwarg
        return pl.BlockSpec(block_shape, index_map)


_INV_SQRT2 = 0.7071067811865476
_SQRT_2_OVER_PI = 0.7978845608028654


def _gelu(h, approximate):
    if approximate:
        # tanh form: single EUP op (own VLIW slot), frees the VALU.
        return 0.5 * h * (1.0 + jnp.tanh(_SQRT_2_OVER_PI * (h + 0.044715 * h * h * h)))
    # erf form matches torch.nn.GELU() default.
    return 0.5 * h * (1.0 + lax.erf(h * _INV_SQRT2))


# ----------------------------- kernels --------------------------------------


def _mlp_resident_kernel(x_ref, w1_ref, b1_ref, w2_ref, b2_ref, o_ref, *, approximate):
    # Cast activations to the weight (compute) dtype in-kernel -> no wrapper pass.
    xv = x_ref[...].astype(w1_ref.dtype)
    h = jnp.dot(xv, w1_ref[...], preferred_element_type=jnp.float32)
    h = h + b1_ref[...].astype(jnp.float32)
    h = _gelu(h, approximate)
    # Dropout (p=0 / eval) is identity.
    h = h.astype(w2_ref.dtype)  # bf16 cast halves live VMEM before 2nd MXU pass
    out = jnp.dot(h, w2_ref[...], preferred_element_type=jnp.float32)
    out = out + b2_ref[...].astype(jnp.float32)
    o_ref[...] = out.astype(o_ref.dtype)
    # TODO(synk): if bundle dumps show spill for very large hidden, sub-tile the
    # tn x hidden intermediate with lax.fori_loop(..., unroll=True).


def _mlp_streamed_kernel(x_ref, w1_ref, b1_ref, w2_ref, b2_ref, o_ref, acc_ref, *,
                         approximate):
    """Hidden-dim streamed variant: grid = (row_blocks, hidden_blocks)."""
    k = pl.program_id(1)

    @pl.when(k == 0)
    def _():
        acc_ref[...] = jnp.zeros_like(acc_ref)

    xv = x_ref[...].astype(w1_ref.dtype)
    h = jnp.dot(xv, w1_ref[...], preferred_element_type=jnp.float32)
    h = h + b1_ref[...].astype(jnp.float32)
    h = _gelu(h, approximate)           # GELU is elementwise -> exact per slab
    h = h.astype(w2_ref.dtype)
    acc_ref[...] += jnp.dot(h, w2_ref[...], preferred_element_type=jnp.float32)

    @pl.when(k == pl.num_programs(1) - 1)
    def _():
        o_ref[...] = (acc_ref[...] + b2_ref[...].astype(jnp.float32)).astype(o_ref.dtype)


# ----------------------------- wrapper ---------------------------------------


def prepare_mlp_params(w1, b1, w2, b2, compute_dtype=jnp.bfloat16):
    """Cast/reshape parameters once at init so per-call forward passes avoid an
    extra HBM pass over the weight matrices (cast becomes a no-op inside
    mlp_block)."""
    return (w1.astype(compute_dtype),
            b1.reshape(1, -1).astype(jnp.float32),
            w2.astype(compute_dtype),
            b2.reshape(1, -1).astype(jnp.float32))


def mlp_block(x, w1, b1, w2, b2, *, compute_dtype=jnp.bfloat16, tile_n=None,
              hidden_tile=None, approximate_gelu=False, force_stream=False):
    """MLPBlock forward (eval mode).

    x:  [..., mlp_dim]
    w1: [mlp_dim, hidden]   b1: [hidden] or [1, hidden]
    w2: [hidden, mlp_dim]   b2: [mlp_dim] or [1, mlp_dim]
    compute_dtype: matmul operand dtype (default bf16 -> native MXU path);
        accumulation is always f32, output keeps x.dtype.
    """
    orig_shape = x.shape
    out_dtype = x.dtype
    d = orig_shape[-1]
    dh, h = w1.shape
    assert dh == d and w2.shape == (h, d)
    assert b1.size == h and b2.size == d

    cdt = jnp.dtype(compute_dtype)
    x2d = x.reshape(-1, d)
    n = x2d.shape[0]

    # No-ops if caller used prepare_mlp_params().
    w1c = w1.astype(cdt)
    w2c = w2.astype(cdt)
    b1r = b1.reshape(1, h).astype(jnp.float32)
    b2r = b2.reshape(1, d).astype(jnp.float32)

    x_item = jnp.dtype(x.dtype).itemsize
    o_item = jnp.dtype(out_dtype).itemsize
    w_item = cdt.itemsize

    budget = _vmem_ceiling_bytes()

    # ---- resident vs streamed-hidden path ------------------------------------
    w_bytes_resident = 2 * d * h * w_item + (h + d) * 4  # single-buffered weights + f32 biases
    stream = force_stream or (w_bytes_resident > budget // 2)
    th = None
    if stream:
        if hidden_tile is not None:
            th = int(hidden_tile)
        else:
            for cand in (512, 384, 256, 128):
                if h % cand == 0:
                    th = cand
                    break
        if th is None or h % th != 0 or th % 128 != 0:
            stream, th = False, None  # cannot tile hidden cleanly -> resident fallback

    # ---- row tile from VMEM budget -------------------------------------------
    if stream:
        per_row = d * x_item + 2 * d * o_item + d * 4 + th * 4 + th * w_item
        fixed = 4 * d * th * w_item + 2 * th * 4 + d * 4
    else:
        per_row = 2 * d * x_item + 2 * d * o_item + d * 4 + h * 4 + h * w_item
        fixed = w_bytes_resident

    n8 = _round_up(max(n, 1), 8)
    if tile_n is None:
        avail = int(0.9 * budget) - fixed
        tn = (avail // per_row) if avail > 0 else 8
        tn = min(tn, 1024 if budget >= 80 * 1024 * 1024 else 512)  # v5e/v6e vs v7x
    else:
        tn = int(tile_n)
    tn = max(min(tn, n8), 8)
    # Multiple-of-256 tiles keep the 256-wide MXU fully fed on v6e/v7x.
    tn = (tn // 256) * 256 if tn >= 256 else _round_up(tn, 8)

    cost = pl.CostEstimate(
        flops=4 * n * d * h,                                  # two matmuls
        transcendentals=n * h,                                # erf/tanh in GELU
        bytes_accessed=n * d * (x_item + o_item) + 2 * d * h * w_item + (h + d) * 4,
    )

    if not stream:
        kernel = functools.partial(_mlp_resident_kernel, approximate=approximate_gelu)
        out = pl.pallas_call(
            kernel,
            out_shape=jax.ShapeDtypeStruct((n, d), out_dtype),
            grid=(pl.cdiv(n, tn),),
            in_specs=[
                pl.BlockSpec((tn, d), lambda i: (i, 0)),            # x (pipelined)
                _single_buffered_spec((d, h), lambda i: (0, 0)),    # w1 (VMEM resident)
                _single_buffered_spec((1, h), lambda i: (0, 0)),    # b1
                _single_buffered_spec((h, d), lambda i: (0, 0)),    # w2
                _single_buffered_spec((1, d), lambda i: (0, 0)),    # b2
            ],
            out_specs=pl.BlockSpec((tn, d), lambda i: (i, 0)),
            compiler_params=pltpu.CompilerParams(
                dimension_semantics=("parallel",),
                vmem_limit_bytes=int(budget),
            ),
            cost_estimate=cost,
        )(x2d, w1c, b1r, w2c, b2r)
    else:
        kernel = functools.partial(_mlp_streamed_kernel, approximate=approximate_gelu)
        out = pl.pallas_call(
            kernel,
            out_shape=jax.ShapeDtypeStruct((n, d), out_dtype),
            grid=(pl.cdiv(n, tn), h // th),
            in_specs=[
                pl.BlockSpec((tn, d), lambda i, k: (i, 0)),          # x (resident over k)
                pl.BlockSpec((d, th), lambda i, k: (0, k)),          # w1 column slab (streamed)
                pl.BlockSpec((1, th), lambda i, k: (0, k)),          # b1 slab
                pl.BlockSpec((th, d), lambda i, k: (k, 0)),          # w2 row slab (streamed)
                _single_buffered_spec((1, d), lambda i, k: (0, 0)),  # b2
            ],
            out_specs=pl.BlockSpec((tn, d), lambda i, k: (i, 0)),
            scratch_shapes=[pltpu.VMEM((tn, d), jnp.float32)],
            compiler_params=pltpu.CompilerParams(
                dimension_semantics=("parallel", "arbitrary"),
                vmem_limit_bytes=int(budget),
            ),
            cost_estimate=cost,
        )(x2d, w1c, b1r, w2c, b2r)

    return out.reshape(orig_shape)


# ----------------------------- reference & tests -----------------------------


def _reference(x2d, w1, b1, w2, b2):
    h = x2d @ w1 + b1
    h = jax.nn.gelu(h, approximate=False)
    return h @ w2 + b2


if __name__ == "__main__":
    # Shapes consistent with MLPBlock(mlp_dim=32, hidden_dim=64), eval mode.
    mlp_dim, hidden_dim = 32, 64
    batch, seq = 2, 8

    key = jax.random.PRNGKey(0)
    kx, kw1, kb1, kw2, kb2, kx3, kw3 = jax.random.split(key, 7)

    x = jax.random.normal(kx, (batch, seq, mlp_dim), dtype=jnp.float32)

    # nn.Linear-style init (uniform +/- 1/sqrt(fan_in)), stored as [in, out].
    lim1 = 1.0 / math.sqrt(mlp_dim)
    w1 = jax.random.uniform(kw1, (mlp_dim, hidden_dim), minval=-lim1, maxval=lim1,
                            dtype=jnp.float32)
    b1 = jax.random.uniform(kb1, (hidden_dim,), minval=-lim1, maxval=lim1,
                            dtype=jnp.float32)
    lim2 = 1.0 / math.sqrt(hidden_dim)
    w2 = jax.random.uniform(kw2, (hidden_dim, mlp_dim), minval=-lim2, maxval=lim2,
                            dtype=jnp.float32)
    b2 = jax.random.uniform(kb2, (mlp_dim,), minval=-lim2, maxval=lim2,
                            dtype=jnp.float32)

    # 1) f32 compute path: exact torch.nn semantics (eval mode), tight tolerance.
    out = jax.block_until_ready(mlp_block(x, w1, b1, w2, b2, compute_dtype=jnp.float32))
    ref = _reference(x.reshape(-1, mlp_dim), w1, b1, w2, b2).reshape(x.shape)
    assert out.shape == x.shape
    assert jnp.allclose(out, ref, atol=2e-5, rtol=2e-5), "f32 mismatch vs reference"

    # 2) Default bf16-compute path, pre-cast params, multi-tile + ragged last block.
    params_bf16 = prepare_mlp_params(w1, b1, w2, b2)        # hoisted cast (once)
    x_big = jax.random.normal(kx, (4, 300, mlp_dim), dtype=jnp.float32)  # 1200 rows
    out_big = jax.block_until_ready(mlp_block(x_big, *params_bf16, tile_n=256))
    ref_big = _reference(
        x_big.reshape(-1, mlp_dim).astype(jnp.bfloat16).astype(jnp.float32),
        w1.astype(jnp.bfloat16).astype(jnp.float32), b1,
        w2.astype(jnp.bfloat16).astype(jnp.float32), b2).reshape(x_big.shape)
    assert out_big.shape == x_big.shape
    assert jnp.allclose(out_big, ref_big, atol=5e-2, rtol=5e-2), "bf16 tiled mismatch"

    # 3) Streamed-hidden path (large-weight fallback), forced at small shapes.
    d3, h3 = 128, 256
    x3 = jax.random.normal(kx3, (2, 40, d3), dtype=jnp.float32)
    kw31, kb31, kw32, kb32 = jax.random.split(kw3, 4)
    l1 = 1.0 / math.sqrt(d3)
    w13 = jax.random.uniform(kw31, (d3, h3), minval=-l1, maxval=l1, dtype=jnp.float32)
    b13 = jax.random.uniform(kb31, (h3,), minval=-l1, maxval=l1, dtype=jnp.float32)
    l2 = 1.0 / math.sqrt(h3)
    w23 = jax.random.uniform(kw32, (h3, d3), minval=-l2, maxval=l2, dtype=jnp.float32)
    b23 = jax.random.uniform(kb32, (d3,), minval=-l2, maxval=l2, dtype=jnp.float32)
    out3 = jax.block_until_ready(
        mlp_block(x3, w13, b13, w23, b23, compute_dtype=jnp.float32,
                  force_stream=True, hidden_tile=128))
    ref3 = _reference(x3.reshape(-1, d3), w13, b13, w23, b23).reshape(x3.shape)
    assert out3.shape == x3.shape
    assert jnp.allclose(out3, ref3, atol=1e-3, rtol=1e-3), "streamed mismatch"

    # TODO(synk): training-mode dropout (p>0) would need pltpu.prng_seed /
    # prng_random_bits + mask; eval-mode identity is implemented here.
    print("KERNEL_OK")
</pallas_src>

<mosaic_0001>
module attributes {stable_mosaic.version = 11 : i64} {
  func.func @_mlp_resident_kernel(%arg0: i32, %arg1: memref<16x32xf32, #tpu.memory_space<vmem>>, %arg2: memref<32x64xf32, #tpu.memory_space<vmem>>, %arg3: memref<1x64xf32, #tpu.memory_space<vmem>>, %arg4: memref<64x32xf32, #tpu.memory_space<vmem>>, %arg5: memref<1x32xf32, #tpu.memory_space<vmem>>, %arg6: memref<16x32xf32, #tpu.memory_space<vmem>>) attributes {dimension_semantics = [#tpu.dimension_semantics<parallel>], iteration_bounds = array<i64: 1>, scalar_prefetch = 0 : i64, scratch_operands = 0 : i64, tpu.core_type = #tpu.core_type<tc>, window_params = [{transform_indices = @transform_0, window_bounds = array<i64: 16, 32>}, {pipeline_mode = #tpu.pipeline_mode<synchronous>, transform_indices = @transform_1, window_bounds = array<i64: 32, 64>}, {pipeline_mode = #tpu.pipeline_mode<synchronous>, transform_indices = @transform_2, window_bounds = array<i64: 1, 64>}, {pipeline_mode = #tpu.pipeline_mode<synchronous>, transform_indices = @transform_3, window_bounds = array<i64: 64, 32>}, {pipeline_mode = #tpu.pipeline_mode<synchronous>, transform_indices = @transform_4, window_bounds = array<i64: 1, 32>}, {transform_indices = @transform_5, window_bounds = array<i64: 16, 32>}]} {
    %c0 = arith.constant 0 : index
    %c0_0 = arith.constant 0 : index
    %0 = vector.load %arg1[%c0, %c0_0] : memref<16x32xf32, #tpu.memory_space<vmem>>, vector<16x32xf32>
    %c0_1 = arith.constant 0 : index
    %c0_2 = arith.constant 0 : index
    %1 = vector.load %arg2[%c0_1, %c0_2] : memref<32x64xf32, #tpu.memory_space<vmem>>, vector<32x64xf32>
    %cst = arith.constant dense<0.000000e+00> : vector<16x64xf32>
    %2 = tpu.matmul %0, %1, %cst {dimension_numbers = #tpu.dot_dimension_numbers<[1], [0], [0], [1], [0, 0, 1, 1], [], []>} : vector<16x32xf32>, vector<32x64xf32>, vector<16x64xf32> -> vector<16x64xf32>
    %c0_3 = arith.constant 0 : index
    %c0_4 = arith.constant 0 : index
    %3 = vector.load %arg3[%c0_3, %c0_4] : memref<1x64xf32, #tpu.memory_space<vmem>>, vector<1x64xf32>
    %4 = vector.broadcast %3 : vector<1x64xf32> to vector<16x64xf32>
    %5 = arith.addf %2, %4 : vector<16x64xf32>
    %cst_5 = arith.constant 5.000000e-01 : f32
    %6 = vector.broadcast %cst_5 : f32 to vector<16x64xf32>
    %7 = arith.mulf %6, %5 : vector<16x64xf32>
    %cst_6 = arith.constant 0.707106769 : f32
    %8 = vector.broadcast %cst_6 : f32 to vector<16x64xf32>
    %9 = arith.mulf %5, %8 : vector<16x64xf32>
    %10 = math.erf %9 : vector<16x64xf32>
    %cst_7 = arith.constant 1.000000e+00 : f32
    %11 = vector.broadcast %cst_7 : f32 to vector<16x64xf32>
    %12 = arith.addf %11, %10 : vector<16x64xf32>
    %13 = arith.mulf %7, %12 : vector<16x64xf32>
    %c0_8 = arith.constant 0 : index
    %c0_9 = arith.constant 0 : index
    %14 = vector.load %arg4[%c0_8, %c0_9] : memref<64x32xf32, #tpu.memory_space<vmem>>, vector<64x32xf32>
    %cst_10 = arith.constant dense<0.000000e+00> : vector<16x32xf32>
    %15 = tpu.matmul %13, %14, %cst_10 {dimension_numbers = #tpu.dot_dimension_numbers<[1], [0], [0], [1], [0, 0, 1, 1], [], []>} : vector<16x64xf32>, vector<64x32xf32>, vector<16x32xf32> -> vector<16x32xf32>
    %c0_11 = arith.constant 0 : index
    %c0_12 = arith.constant 0 : index
    %16 = vector.load %arg5[%c0_11, %c0_12] : memref<1x32xf32, #tpu.memory_space<vmem>>, vector<1x32xf32>
    %17 = vector.broadcast %16 : vector<1x32xf32> to vector<16x32xf32>
    %18 = arith.addf %15, %17 : vector<16x32xf32>
    %c0_13 = arith.constant 0 : index
    %c0_14 = arith.constant 0 : index
    %19 = vector.load %arg6[%c0_13, %c0_14] : memref<16x32xf32, #tpu.memory_space<vmem>>, vector<16x32xf32>
    tpu.vector_store %arg6[%c0_13, %c0_14], %18 {strides = array<i32>} : memref<16x32xf32, #tpu.memory_space<vmem>>, vector<16x32xf32>,
    return
  }
  func.func @transform_0(%arg0: i32) -> (i32, i32) {
    %c0_i32 = arith.constant 0 : i32
    %c0_i32_0 = arith.constant 0 : i32
    return %arg0, %c0_i32 : i32, i32
  }
  func.func @transform_1(%arg0: i32) -> (i32, i32) {
    %c0_i32 = arith.constant 0 : i32
    %c0_i32_0 = arith.constant 0 : i32
    %c0_i32_1 = arith.constant 0 : i32
    return %c0_i32, %c0_i32_0 : i32, i32
  }
  func.func @transform_2(%arg0: i32) -> (i32, i32) {
    %c0_i32 = arith.constant 0 : i32
    %c0_i32_0 = arith.constant 0 : i32
    %c0_i32_1 = arith.constant 0 : i32
    return %c0_i32, %c0_i32_0 : i32, i32
  }
  func.func @transform_3(%arg0: i32) -> (i32, i32) {
    %c0_i32 = arith.constant 0 : i32
    %c0_i32_0 = arith.constant 0 : i32
    %c0_i32_1 = arith.constant 0 : i32
    return %c0_i32, %c0_i32_0 : i32, i32
  }
  func.func @transform_4(%arg0: i32) -> (i32, i32) {
    %c0_i32 = arith.constant 0 : i32
    %c0_i32_0 = arith.constant 0 : i32
    %c0_i32_1 = arith.constant 0 : i32
    return %c0_i32, %c0_i32_0 : i32, i32
  }
  func.func @transform_5(%arg0: i32) -> (i32, i32) {
    %c0_i32 = arith.constant 0 : i32
    %c0_i32_0 = arith.constant 0 : i32
    return %arg0, %c0_i32 : i32, i32
  }
}

</mosaic_0001>

<llo_original>
// kernel: tpu_custom_call.1
$region0: #{tpu_custom_call.1}
  #allocation0 [shape = 'u32[]', space=smem, size = 0x4, offset = 0x4, fixed_abs, tag = 'smem constant byte address 0x4 - core index']
  #allocation1 [shape = 'u32[72,128]{1,0:T(1,128)}', space=vmem, size = 0x9000, scoped, tag = 'internal scratch']
  %s0 = inlined_call_operand.vmem [shape: f32[16,32], index: 0, kind: input, shape index: {}]
  %s1 = inlined_call_operand.vmem [shape: f32[32,64], index: 1, kind: input, shape index: {}]
  %s2 = inlined_call_operand.vmem [shape: f32[1,64], index: 2, kind: input, shape index: {}]
  %s3 = inlined_call_operand.vmem [shape: f32[64,32], index: 3, kind: input, shape index: {}]
  %s4 = inlined_call_operand.vmem [shape: f32[1,32], index: 4, kind: input, shape index: {}]
  %s5 = inlined_call_operand.hbm [shape: f32[16,32], index: 5, kind: output, shape index: {}]
  %s6 = sld [smem:[#allocation0]]
  $region30: #{tpu_custom_call.1} parent=0
    _
  %s8 = ssub.s32 1, %s6
  %s9 = scalar_select 0, %s8, %s6
  $region1: #{tpu_custom_call.1} parent=0
    #allocation2 [shape = 'u8[8192]{0}', space=vmem, size = 0x2000, scoped, tag = 'output window, operand 0, single buffered']
    #allocation3 [shape = 's32[1]{0}', space=sflag, size = 0x4, scoped, tag = 'scoped memory for tpu_custom_call.1']
    %10 = vsyncpa [#allocation3], 0
    // Predicated region
    $region2: #{tpu_custom_call.1} parent=1 // pred_check
      _
    $region3: #{tpu_custom_call.1} parent=1 // pred_check_branch
      %12 = sbr.rel (0) target = $region5
    $region4: #{tpu_custom_call.1} parent=1 // pred_region
      _
    $region5: #{tpu_custom_call.1} parent=1 // pred_fallthru
      _
    // Predicated region
    $region6: #{tpu_custom_call.1} parent=1 // pred_check
      _
    $region7: #{tpu_custom_call.1} parent=1 // pred_check_branch
      %14 = sbr.rel (0) target = $region9
    $region8: #{tpu_custom_call.1} parent=1 // pred_region
      _
    $region9: #{tpu_custom_call.1} parent=1 // pred_fallthru
      _
    // Predicated region
    $region10: #{tpu_custom_call.1} parent=1 // pred_check
      _
    $region11: #{tpu_custom_call.1} parent=1 // pred_check_branch
      %16 = sbr.rel (0) target = $region13
    $region12: #{tpu_custom_call.1} parent=1 // pred_region
      _
    $region13: #{tpu_custom_call.1} parent=1 // pred_fallthru
      _
    // Predicated region
    $region14: #{tpu_custom_call.1} parent=1 // pred_check
      _
    $region15: #{tpu_custom_call.1} parent=1 // pred_check_branch
      %18 = sbr.rel (0) target = $region17
    $region16: #{tpu_custom_call.1} parent=1 // pred_region
      _
    $region17: #{tpu_custom_call.1} parent=1 // pred_fallthru
      _
    // Predicated region
    $region18: #{tpu_custom_call.1} parent=1 // pred_check
      _
    $region19: #{tpu_custom_call.1} parent=1 // pred_check_branch
      %20 = sbr.rel (0) target = $region21
    $region20: #{tpu_custom_call.1} parent=1 // pred_region
      _
    $region21: #{tpu_custom_call.1} parent=1 // pred_fallthru
      _
    %v21 = vld [vmem:[%s0] sm:$0xff]
    %v22 = vld [vmem:[%s0 + $0x8] sm:$0xff]
    %v23 = vld [vmem:[%s1] sm:$0xff]
    %v24 = vld [vmem:[%s1 + $0x8] sm:$0xff]
    %v25 = vld [vmem:[%s1 + $0x10] sm:$0xff]
    %v26 = vld [vmem:[%s1 + $0x18] sm:$0xff]
    %v27 = vld [vmem:[%s2] sm:$0x1]
    %v29 = vperm.slane %v27, 0
    %vm31 = vcmask 261120
    %v33 = vsel %vm31, %v21, 0
    %v36 = vsel %vm31, %v22, 0
    %38 = vmatpush.msra.mxu0 0.0
    %39 = vmatpush.msra.mxu0 0.0
    %40 = vmatpush.msra.mxu0 0.0
    %41 = vmatpush.msra.mxu0 0.0
    %42 = vmatpush.msra.mxu0 0.0
    %43 = vmatpush.msra.mxu0 0.0
    %44 = vmatpush.msra.mxu0 0.0
    %45 = vmatpush.msra.mxu0 0.0
    %46 = vmatpush.msra.mxu0 0.0
    %47 = vmatpush.msra.mxu0 0.0
    %48 = vmatpush.msra.mxu0 0.0
    %49 = vmatpush.msra.mxu0 0.0
    %50 = vmatpush.msra.mxu0 %v26
    %51 = vmatpush.msra.mxu0 %v25
    %52 = vmatpush.msra.mxu0 %v24
    %53 = vmatpush.msra.mxu0 %v23
    %54 = vmatmul.f32.gmra.mxu0 %v33
    %v55 = vpop.f32.mrf.mxu0
    %v56 = vadd.f32 %v29, %v55
    %57 = vmatmul.f32.gmra.mxu0 %v36
    %v58 = vpop.f32.mrf.mxu0
    %v59 = vadd.f32 %v29, %v58
    %60 = vdwg.mxu0
    %v61 = vmul.f32 %v56, 0.5
    %v62 = vmul.f32 %v59, 0.5
    %v63 = vmul.f32 %v56, 0.70710677
    %v64 = vmul.f32 %v59, 0.70710677
    %v65 = vmul.f32 %v63, %v63
    %v66 = vmin.f32 16.0, %v65
    %v67 = vmul.f32 %v66, 2.1237322e-06
    %v68 = vadd.f32 %v67, 0.00028619796
    %v69 = vmul.f32 %v66, %v68
    %v70 = vadd.f32 %v69, 0.0036580483
    %v71 = vmul.f32 %v66, %v70
    %v72 = vadd.f32 %v71, 0.05243302
    %v73 = vmul.f32 %v66, %v72
    %v74 = vadd.f32 %v73, 0.18741608
    %v75 = vmul.f32 %v66, %v74
    %v76 = vadd.f32 %v75, 1.1283791
    %v77 = vmul.f32 %v63, %v76
    %v78 = vmul.f32 %v66, 3.8918573e-05
    %v79 = vadd.f32 %v78, 0.001143296
    %v80 = vmul.f32 %v66, %v79
    %v81 = vadd.f32 %v80, 0.014752088
    %v82 = vmul.f32 %v66, %v81
    %v83 = vadd.f32 %v82, 0.112945676
    %v84 = vmul.f32 %v66, %v83
    %v85 = vadd.f32 %v84, 0.4994258
    %v86 = vmul.f32 %v66, %v85
    %v87 = vadd.f32 %v86, 1.0
    %v88 = vrcp.pop %v87
    %v89 = vmul.f32 %v87, %v88
    %v90 = vsub.f32 1.0, %v89
    %v91 = vmul.f32 %v88, %v90
    %v92 = vadd.f32 %v88, %v91
    %vm93 = vweird.f32 %v87
    %vm94 = vweird.f32 %v88
    %vm95 = vmor %vm93, %vm94
    %v96 = vsel %vm95, %v88, %v92
    %v97 = vand.u32 2147483647, %v87
    %vm98 = vcmp.eq.f32.partialorder %v97, 8.507059e+37
    %v99 = vand.u32 %v87, 2147483648
    %v100 = vor.u32 1.1754944e-38, %v99
    %v101 = vsel %vm98, %v100, %v96
    %v102 = vmul.f32 %v77, %v101
    %v103 = vmin.f32 %v102, 1.0
    %v104 = vmax.f32 %v103, -1.0
    %v105 = vmul.f32 %v64, %v64
    %v106 = vmin.f32 16.0, %v105
    %v107 = vmul.f32 %v106, 2.1237322e-06
    %v108 = vadd.f32 %v107, 0.00028619796
    %v109 = vmul.f32 %v106, %v108
    %v110 = vadd.f32 %v109, 0.0036580483
    %v111 = vmul.f32 %v106, %v110
    %v112 = vadd.f32 %v111, 0.05243302
    %v113 = vmul.f32 %v106, %v112
    %v114 = vadd.f32 %v113, 0.18741608
    %v115 = vmul.f32 %v106, %v114
    %v116 = vadd.f32 %v115, 1.1283791
    %v117 = vmul.f32 %v64, %v116
    %v118 = vmul.f32 %v106, 3.8918573e-05
    %v119 = vadd.f32 %v118, 0.001143296
    %v120 = vmul.f32 %v106, %v119
    %v121 = vadd.f32 %v120, 0.014752088
    %v122 = vmul.f32 %v106, %v121
    %v123 = vadd.f32 %v122, 0.112945676
    %v124 = vmul.f32 %v106, %v123
    %v125 = vadd.f32 %v124, 0.4994258
    %v126 = vmul.f32 %v106, %v125
    %v127 = vadd.f32 %v126, 1.0
    %v128 = vrcp.pop %v127
    %v129 = vmul.f32 %v127, %v128
    %v130 = vsub.f32 1.0, %v129
    %v131 = vmul.f32 %v128, %v130
    %v132 = vadd.f32 %v128, %v131
    %vm133 = vweird.f32 %v127
    %vm134 = vweird.f32 %v128
    %vm135 = vmor %vm133, %vm134
    %v136 = vsel %vm135, %v128, %v132
    %v137 = vand.u32 2147483647, %v127
    %vm138 = vcmp.eq.f32.partialorder %v137, 8.507059e+37
    %v139 = vand.u32 %v127, 2147483648
    %v140 = vor.u32 1.1754944e-38, %v139
    %v141 = vsel %vm138, %v140, %v136
    %v142 = vmul.f32 %v117, %v141
    %v143 = vmin.f32 %v142, 1.0
    %v144 = vmax.f32 %v143, -1.0
    %v145 = vadd.f32 %v104, 1.0
    %v146 = vadd.f32 %v144, 1.0
    %v147 = vmul.f32 %v61, %v145
    %v148 = vmul.f32 %v62, %v146
    %v149 = vld [vmem:[%s3] sm:$0xff]
    %v150 = vld [vmem:[%s3 + $0x8] sm:$0xff]
    %v151 = vld [vmem:[%s3 + $0x10] sm:$0xff]
    %v152 = vld [vmem:[%s3 + $0x18] sm:$0xff]
    %v153 = vld [vmem:[%s3 + $0x20] sm:$0xff]
    %v154 = vld [vmem:[%s3 + $0x28] sm:$0xff]
    %v155 = vld [vmem:[%s3 + $0x30] sm:$0xff]
    %v156 = vld [vmem:[%s3 + $0x38] sm:$0xff]
    %v157 = vld [vmem:[%s4] sm:$0x1]
    %v159 = vperm.slane %v157, 0
    %vm161 = vcmask 523264
    %v163 = vsel %vm161, %v147, 0
    %v166 = vsel %vm161, %v148, 0
    %168 = vmatpush.msra.mxu0 0.0
    %169 = vmatpush.msra.mxu0 0.0
    %170 = vmatpush.msra.mxu0 0.0
    %171 = vmatpush.msra.mxu0 0.0
    %172 = vmatpush.msra.mxu0 0.0
    %173 = vmatpush.msra.mxu0 0.0
    %174 = vmatpush.msra.mxu0 0.0
    %175 = vmatpush.msra.mxu0 0.0
    %176 = vmatpush.msra.mxu0 %v156
    %177 = vmatpush.msra.mxu0 %v155
    %178 = vmatpush.msra.mxu0 %v154
    %179 = vmatpush.msra.mxu0 %v153
    %180 = vmatpush.msra.mxu0 %v152
    %181 = vmatpush.msra.mxu0 %v151
    %182 = vmatpush.msra.mxu0 %v150
    %183 = vmatpush.msra.mxu0 %v149
    %184 = vmatmul.f32.gmra.mxu0 %v163
    %v185 = vpop.f32.mrf.mxu0
    %v186 = vadd.f32 %v159, %v185
    %187 = vmatmul.f32.gmra.mxu0 %v166
    %v188 = vpop.f32.mrf.mxu0
    %v189 = vadd.f32 %v159, %v188
    %190 = vdwg.mxu0
    %191 = vst.msk [vmem:[#allocation2] sm:$0xff] %vm31, %v186
    %192 = vst.msk [vmem:[#allocation2 + $0x8] sm:$0xff] %vm31, %v189
    // Predicated region
    $region22: #{tpu_custom_call.1} parent=1 // pred_check
      _
    $region23: #{tpu_custom_call.1} parent=1 // pred_check_branch
      %194 = sbr.rel (0) target = $region25
    $region24: #{tpu_custom_call.1} parent=1 // pred_region
      %196 = vsyncadd [#allocation3], 0
      %s197 = sshll.u32 [#allocation2], 4
      %s198 = int_to_ptr.vmem [resolvable:$true] %s197
      %s199 = sshll.u32 %s5, 4
      %s200 = int_to_ptr.hbm [resolvable:$true] %s199
      %205 = dma.vmem_to_hbm [thread:$0]  %s198, 256, %s200, [#allocation3], 128, 128, 8
    $region25: #{tpu_custom_call.1} parent=1 // pred_fallthru
      _
    // Predicated region
    $region26: #{tpu_custom_call.1} parent=1 // pred_check
      _
    $region27: #{tpu_custom_call.1} parent=1 // pred_check_branch
      %207 = sbr.rel (0) target = $region29
    $region28: #{tpu_custom_call.1} parent=1 // pred_region
      %209 = dma.done [#allocation3], 256
    $region29: #{tpu_custom_call.1} parent=1 // pred_fallthru
      _
    %210 = vsyncpa [#allocation3], 1

</llo_original>
